<compile_context>
chip_gen: v7x
topology: tpu7x:2x2x1
jax: 0.10.0
libtpu: 0.0.40
codegen_flags: <defaults>
</compile_context>

<pallas_src>
import functools
import math

import jax
import jax.numpy as jnp
from jax import lax
from jax.experimental import pallas as pl
from jax.experimental.pallas import tpu as pltpu


def _round_up(v, m):
    return ((v + m - 1) // m) * m


def _layer_math(g_bf16, h0_f32, state_f32, w_bf16, theta, alpha):
    """One GCNII layer (variant=False, residual=False): bf16 MXU operands, f32 epilogue."""
    # hi = G @ layer_inner                                  (MXU, bf16 x bf16 -> f32 acc)
    hi = jnp.dot(g_bf16, state_f32.astype(jnp.bfloat16),
                 preferred_element_type=jnp.float32)
    # support = (1 - alpha) * hi + alpha * h0               (VPU, f32)
    support = (1.0 - alpha) * hi + alpha * h0_f32
    # out = relu(theta * (support @ W) + (1 - theta) * support)
    sw = jnp.dot(support.astype(jnp.bfloat16), w_bf16,
                 preferred_element_type=jnp.float32)
    out = theta * sw + (1.0 - theta) * support
    return jnp.maximum(out, 0.0)


def _gcnii_resident_kernel(theta_ref, g_ref, x_ref, w_ref, out_ref, *, alpha, nlayers):
    """All layers in one invocation; G / h0 / stacked W fully VMEM-resident (one copy each)."""
    g = g_ref[...]        # (Np, Np) bf16, resident
    h0 = x_ref[...]       # (Np, Hp) f32, resident

    def body(l, state):
        return _layer_math(g, h0, state, w_ref[l], theta_ref[l], alpha)

    out_ref[...] = lax.fori_loop(0, nlayers, body, h0, unroll=nlayers <= 8)


def _gcnii_streamed_kernel(theta_ref, g_ref, x_ref, w_ref, out_ref, *, alpha):
    """One grid step == one layer; state lives in the resident out block, W_l streams in."""
    l = pl.program_id(0)

    @pl.when(l == 0)
    def _():
        out_ref[...] = x_ref[...]

    out_ref[...] = _layer_math(g_ref[...], x_ref[...], out_ref[...],
                               w_ref[...], theta_ref[l], alpha)


def _pick_vmem_limit_bytes():
    """Generation-aware VMEM cap: ~112 MiB on 128 MiB parts (v5e/v6e), ~48 MiB on v7x."""
    cap = None
    try:
        cap = getattr(pltpu.get_tpu_info(), "vmem_capacity_bytes", None)
    except Exception:
        cap = None
    if not cap:
        cap = 64 << 20  # conservative fallback: v7x per-TensorCore VMEM
    return int(min(max(cap - (16 << 20), 32 << 20), 112 << 20))


@functools.partial(jax.jit, static_argnames=("lamda", "alpha"))
def _gcnii_forward_impl(x, g, weights, *, lamda, alpha):
    n, h = x.shape
    nlayers = len(weights)

    # Pad nodes to a sublane multiple (16 covers both f32 and bf16 packing) and the
    # hidden dim to a full 128-lane multiple -> lane-dense stores, full-width MXU.
    n_pad = _round_up(n, 16)
    h_pad = _round_up(h, 128)

    x_p = jnp.pad(x.astype(jnp.float32), ((0, n_pad - n), (0, h_pad - h)))
    g_p = jnp.pad(g.astype(jnp.float32),
                  ((0, n_pad - n), (0, n_pad - n))).astype(jnp.bfloat16)
    w_p = jnp.pad(jnp.stack(weights).astype(jnp.float32),
                  ((0, 0), (0, h_pad - h), (0, h_pad - h))).astype(jnp.bfloat16)

    thetas = jnp.array([math.log(lamda / (i + 1) + 1.0) for i in range(nlayers)],
                       dtype=jnp.float32)

    vmem_limit = _pick_vmem_limit_bytes()

    # VMEM budget (bytes) if everything is resident in one kernel invocation.
    resident_bytes = (
        n_pad * n_pad * 2                # G (bf16)
        + n_pad * h_pad * 4              # h0 (f32)
        + n_pad * h_pad * 4              # output / state (f32)
        + nlayers * h_pad * h_pad * 2    # stacked W (bf16)
        + 3 * n_pad * h_pad * 4          # hi / support / sw f32 temporaries
    )
    use_resident = resident_bytes <= int(0.85 * vmem_limit)

    flops = nlayers * (2 * n_pad * n_pad * h_pad + 2 * n_pad * h_pad * h_pad)
    bytes_accessed = (2 * n_pad * n_pad + 4 * n_pad * h_pad
                      + 2 * nlayers * h_pad * h_pad + 4 * n_pad * h_pad)
    cost = pl.CostEstimate(flops=flops, transcendentals=0, bytes_accessed=bytes_accessed)
    out_shape = jax.ShapeDtypeStruct((n_pad, h_pad), jnp.float32)

    if use_resident:
        kernel = functools.partial(_gcnii_resident_kernel,
                                   alpha=float(alpha), nlayers=nlayers)
        out_p = pl.pallas_call(
            kernel,
            out_shape=out_shape,
            in_specs=[
                pl.BlockSpec(memory_space=pltpu.MemorySpace.SMEM),  # thetas (nlayers,)
                pl.BlockSpec(memory_space=pltpu.MemorySpace.VMEM),  # G bf16, resident
                pl.BlockSpec(memory_space=pltpu.MemorySpace.VMEM),  # h0 f32, resident
                pl.BlockSpec(memory_space=pltpu.MemorySpace.VMEM),  # stacked W bf16, resident
            ],
            out_specs=pl.BlockSpec(memory_space=pltpu.MemorySpace.VMEM),
            compiler_params=pltpu.CompilerParams(vmem_limit_bytes=vmem_limit),
            cost_estimate=cost,
        )(thetas, g_p, x_p, w_p)
    else:
        # Layer-streamed fallback: residents single-buffered, W_l streamed per grid step.
        # TODO(synk): if even this exceeds VMEM (huge N), stream (TM, n_pad) row panels
        #             of G with an inner pltpu.emit_pipeline.
        kernel = functools.partial(_gcnii_streamed_kernel, alpha=float(alpha))
        out_p = pl.pallas_call(
            kernel,
            out_shape=out_shape,
            grid_spec=pltpu.PrefetchScalarGridSpec(
                num_scalar_prefetch=1,            # thetas -> SMEM
                grid=(nlayers,),
                in_specs=[
                    pl.BlockSpec((n_pad, n_pad), lambda l, th: (0, 0),
                                 pipeline_mode=pl.Buffered(1)),          # G resident
                    pl.BlockSpec((n_pad, h_pad), lambda l, th: (0, 0),
                                 pipeline_mode=pl.Buffered(1)),          # h0 resident
                    pl.BlockSpec((pl.Squeezed(), h_pad, h_pad),
                                 lambda l, th: (l, 0, 0)),               # W_l streamed
                ],
                out_specs=pl.BlockSpec((n_pad, h_pad), lambda l, th: (0, 0),
                                       pipeline_mode=pl.Buffered(1)),    # state resident
            ),
            compiler_params=pltpu.CompilerParams(
                dimension_semantics=("arbitrary",),   # layers are strictly sequential
                vmem_limit_bytes=vmem_limit,
            ),
            cost_estimate=cost,
        )(thetas, g_p, x_p, w_p)

    return out_p[:n, :h]


def gcnii_forward(x, adj, g, weights, *, lamda, alpha):
    """Mirrors GCNII.forward (eval mode; variant=False, residual=False).

    adj is accepted for signature parity with the PyTorch module but, as in the
    reference forward path (variant=False), only G is used for propagation.
    """
    del adj
    return _gcnii_forward_impl(x, g, tuple(weights),
                               lamda=float(lamda), alpha=float(alpha))


def gcnii_reference(x, adj, g, weights, *, lamda, alpha):
    """Plain-JAX f32 reference for correctness checking."""
    del adj
    h0 = x
    out = x
    for i, w in enumerate(weights):
        l = i + 1
        theta = math.log(lamda / l + 1.0)
        hi = g @ out
        support = (1.0 - alpha) * hi + alpha * h0
        o = theta * (support @ w) + (1.0 - theta) * support
        out = jnp.maximum(o, 0.0)
    return out


if __name__ == "__main__":
    # Small, deterministic setup consistent with the module:
    #   nfeat = nhidden = 32 (input already at hidden width), nlayers = 2.
    N = 16          # number of graph nodes
    NHIDDEN = 32
    NLAYERS = 2
    LAMDA = 0.5
    ALPHA = 0.1

    key = jax.random.PRNGKey(0)
    k_x, k_g, k_w = jax.random.split(key, 3)

    x = jax.random.normal(k_x, (N, NHIDDEN), dtype=jnp.float32)

    # Deterministic symmetric-normalized propagation matrix G.
    a = (jax.random.uniform(k_g, (N, N)) < 0.3).astype(jnp.float32)
    a = jnp.maximum(a, a.T) + jnp.eye(N, dtype=jnp.float32)          # adj + self loops
    deg = jnp.sum(a, axis=1)
    d_inv_sqrt = 1.0 / jnp.sqrt(deg)
    G = a * d_inv_sqrt[:, None] * d_inv_sqrt[None, :]
    adj = a  # kept for signature parity; unused in forward

    # GraphConvolution weights: uniform(-stdv, stdv), stdv = 1/sqrt(out_features)
    stdv = 1.0 / math.sqrt(NHIDDEN)
    wkeys = jax.random.split(k_w, NLAYERS)
    weights = [
        jax.random.uniform(wk, (NHIDDEN, NHIDDEN), minval=-stdv, maxval=stdv,
                           dtype=jnp.float32)
        for wk in wkeys
    ]

    out = gcnii_forward(x, adj, G, weights, lamda=LAMDA, alpha=ALPHA)
    out = jax.block_until_ready(out)

    ref = gcnii_reference(x, adj, G, weights, lamda=LAMDA, alpha=ALPHA)
    assert out.shape == (N, NHIDDEN)
    # bf16 MXU operands with f32 accumulation -> loosened tolerance vs the f32 reference.
    assert jnp.allclose(out, ref, atol=5e-2, rtol=5e-2), (
        "mismatch vs reference (max abs err "
        f"{float(jnp.max(jnp.abs(out - ref))):.4g})"
    )

    print("KERNEL_OK")
</pallas_src>

<mosaic_0001>
module attributes {stable_mosaic.version = 11 : i64} {
  func.func @_gcnii_resident_kernel(%arg0: memref<2xf32, #tpu.memory_space<smem>>, %arg1: memref<16x16xbf16, #tpu.memory_space<vmem>>, %arg2: memref<16x128xf32, #tpu.memory_space<vmem>>, %arg3: memref<2x128x128xbf16, #tpu.memory_space<vmem>>, %arg4: memref<16x128xf32, #tpu.memory_space<vmem>>) attributes {dimension_semantics = [], scalar_prefetch = 0 : i64, scratch_operands = 0 : i64, tpu.core_type = #tpu.core_type<tc>} {
    %c0 = arith.constant 0 : index
    %c0_0 = arith.constant 0 : index
    %0 = vector.load %arg1[%c0, %c0_0] : memref<16x16xbf16, #tpu.memory_space<vmem>>, vector<16x16xbf16>
    %c0_1 = arith.constant 0 : index
    %c0_2 = arith.constant 0 : index
    %1 = vector.load %arg2[%c0_1, %c0_2] : memref<16x128xf32, #tpu.memory_space<vmem>>, vector<16x128xf32>
    %c0_i32 = arith.constant 0 : i32
    %2 = arith.index_cast %c0_i32 : i32 to index
    %c0_3 = arith.constant 0 : index
    %c0_4 = arith.constant 0 : index
    %3 = vector.load %arg3[%2, %c0_3, %c0_4] : memref<2x128x128xbf16, #tpu.memory_space<vmem>>, vector<1x128x128xbf16>
    %4 = vector.shape_cast %3 : vector<1x128x128xbf16> to vector<128x128xbf16>
    %5 = arith.index_cast %c0_i32 : i32 to index
    %6 = memref.load %arg0[%5] : memref<2xf32, #tpu.memory_space<smem>>
    %7 = arith.truncf %1 : vector<16x128xf32> to vector<16x128xbf16>
    %cst = arith.constant dense<0.000000e+00> : vector<16x128xf32>
    %8 = tpu.matmul %0, %7, %cst {dimension_numbers = #tpu.dot_dimension_numbers<[1], [0], [0], [1], [0, 0, 1, 1], [], []>} : vector<16x16xbf16>, vector<16x128xbf16>, vector<16x128xf32> -> vector<16x128xf32>
    %cst_5 = arith.constant 0.899999976 : f32
    %9 = vector.broadcast %cst_5 : f32 to vector<16x128xf32>
    %10 = arith.mulf %9, %8 : vector<16x128xf32>
    %cst_6 = arith.constant 1.000000e-01 : f32
    %11 = vector.broadcast %cst_6 : f32 to vector<16x128xf32>
    %12 = arith.mulf %11, %1 : vector<16x128xf32>
    %13 = arith.addf %10, %12 : vector<16x128xf32>
    %14 = arith.truncf %13 : vector<16x128xf32> to vector<16x128xbf16>
    %cst_7 = arith.constant dense<0.000000e+00> : vector<16x128xf32>
    %15 = tpu.matmul %14, %4, %cst_7 {dimension_numbers = #tpu.dot_dimension_numbers<[1], [0], [0], [1], [0, 0, 1, 1], [], []>} : vector<16x128xbf16>, vector<128x128xbf16>, vector<16x128xf32> -> vector<16x128xf32>
    %16 = vector.broadcast %6 : f32 to vector<16x128xf32>
    %17 = arith.mulf %16, %15 : vector<16x128xf32>
    %cst_8 = arith.constant 1.000000e+00 : f32
    %18 = arith.subf %cst_8, %6 : f32
    %19 = vector.broadcast %18 : f32 to vector<16x128xf32>
    %20 = arith.mulf %19, %13 : vector<16x128xf32>
    %21 = arith.addf %17, %20 : vector<16x128xf32>
    %cst_9 = arith.constant 0.000000e+00 : f32
    %22 = vector.broadcast %cst_9 : f32 to vector<16x128xf32>
    %23 = arith.maximumf %21, %22 : vector<16x128xf32>
    %c1_i32 = arith.constant 1 : i32
    %24 = arith.index_cast %c1_i32 : i32 to index
    %c0_10 = arith.constant 0 : index
    %c0_11 = arith.constant 0 : index
    %25 = vector.load %arg3[%24, %c0_10, %c0_11] : memref<2x128x128xbf16, #tpu.memory_space<vmem>>, vector<1x128x128xbf16>
    %26 = vector.shape_cast %25 : vector<1x128x128xbf16> to vector<128x128xbf16>
    %27 = arith.index_cast %c1_i32 : i32 to index
    %28 = memref.load %arg0[%27] : memref<2xf32, #tpu.memory_space<smem>>
    %29 = arith.truncf %23 : vector<16x128xf32> to vector<16x128xbf16>
    %cst_12 = arith.constant dense<0.000000e+00> : vector<16x128xf32>
    %30 = tpu.matmul %0, %29, %cst_12 {dimension_numbers = #tpu.dot_dimension_numbers<[1], [0], [0], [1], [0, 0, 1, 1], [], []>} : vector<16x16xbf16>, vector<16x128xbf16>, vector<16x128xf32> -> vector<16x128xf32>
    %cst_13 = arith.constant 0.899999976 : f32
    %31 = vector.broadcast %cst_13 : f32 to vector<16x128xf32>
    %32 = arith.mulf %31, %30 : vector<16x128xf32>
    %cst_14 = arith.constant 1.000000e-01 : f32
    %33 = vector.broadcast %cst_14 : f32 to vector<16x128xf32>
    %34 = arith.mulf %33, %1 : vector<16x128xf32>
    %35 = arith.addf %32, %34 : vector<16x128xf32>
    %36 = arith.truncf %35 : vector<16x128xf32> to vector<16x128xbf16>
    %cst_15 = arith.constant dense<0.000000e+00> : vector<16x128xf32>
    %37 = tpu.matmul %36, %26, %cst_15 {dimension_numbers = #tpu.dot_dimension_numbers<[1], [0], [0], [1], [0, 0, 1, 1], [], []>} : vector<16x128xbf16>, vector<128x128xbf16>, vector<16x128xf32> -> vector<16x128xf32>
    %38 = vector.broadcast %28 : f32 to vector<16x128xf32>
    %39 = arith.mulf %38, %37 : vector<16x128xf32>
    %cst_16 = arith.constant 1.000000e+00 : f32
    %40 = arith.subf %cst_16, %28 : f32
    %41 = vector.broadcast %40 : f32 to vector<16x128xf32>
    %42 = arith.mulf %41, %35 : vector<16x128xf32>
    %43 = arith.addf %39, %42 : vector<16x128xf32>
    %cst_17 = arith.constant 0.000000e+00 : f32
    %44 = vector.broadcast %cst_17 : f32 to vector<16x128xf32>
    %45 = arith.maximumf %43, %44 : vector<16x128xf32>
    %c2_i32 = arith.constant 2 : i32
    %c0_18 = arith.constant 0 : index
    %c0_19 = arith.constant 0 : index
    %46 = vector.load %arg4[%c0_18, %c0_19] : memref<16x128xf32, #tpu.memory_space<vmem>>, vector<16x128xf32>
    tpu.vector_store %arg4[%c0_18, %c0_19], %45 {strides = array<i32>} : memref<16x128xf32, #tpu.memory_space<vmem>>, vector<16x128xf32>,
    return
  }
}

</mosaic_0001>

<llo_original>
// kernel: _gcnii_forward_impl.1
$region0: #{_gcnii_forward_impl.1}
  #allocation0 [shape = 'u32[]', space=smem, size = 0x4, offset = 0x4, fixed_abs, tag = 'smem constant byte address 0x4 - core index']
  #allocation1 [shape = 'u32[144,128]{1,0:T(1,128)}', space=vmem, size = 0x12000, scoped, tag = 'internal scratch']
  %s0 = inlined_call_operand.vmem [shape: f32[2], index: 0, kind: input, shape index: {}]
  %s1 = inlined_call_operand.vmem [shape: bf16[16,16], index: 1, kind: input, shape index: {}]
  %s2 = inlined_call_operand.vmem [shape: f32[16,128], index: 2, kind: input, shape index: {}]
  %s3 = inlined_call_operand.vmem [shape: bf16[2,128,128], index: 3, kind: input, shape index: {}]
  %s4 = inlined_call_operand.hbm [shape: f32[16,128], index: 4, kind: output, shape index: {}]
  %s5 = sld [smem:[#allocation0]]
  $region30: #{_gcnii_forward_impl.1} parent=0
    _
  %s7 = ssub.s32 1, %s5
  %s8 = scalar_select 0, %s7, %s5
  $region1: #{_gcnii_forward_impl.1} parent=0
    #allocation2 [shape = 'u8[512]{0}', space=smem, size = 0x200, scoped, tag = 'input window, operand 0, single buffered']
    #allocation3 [shape = 's32[1]{0}', space=sflag, size = 0x4, scoped, tag = 'scoped memory for _gcnii_forward_impl.1']
    #allocation4 [shape = 's32[1]{0}', space=sflag, size = 0x4, scoped, tag = 'scoped memory for _gcnii_forward_impl.1']
    #allocation5 [shape = 'u8[8192]{0}', space=vmem, size = 0x2000, scoped, tag = 'output window, operand 0, single buffered']
    %9 = vsyncpa [#allocation4], 0
    %10 = vsyncpa [#allocation3], 0
    // Predicated region
    $region2: #{_gcnii_forward_impl.1} parent=1 // pred_check
      _
    $region3: #{_gcnii_forward_impl.1} parent=1 // pred_check_branch
      %12 = sbr.rel (0) target = $region5
    $region4: #{_gcnii_forward_impl.1} parent=1 // pred_region
      %s14 = ssub.s32 16, 16
      %15 = vsyncadd [#allocation4], %s14
      %s17 = sshll.u32 %s0, 4
      %s18 = int_to_ptr.vmem [resolvable:$true] %s17
      %20 = dma.vmem_to_smem %s18, 16, [#allocation2], [#allocation4]
    $region5: #{_gcnii_forward_impl.1} parent=1 // pred_fallthru
      _
    // Predicated region
    $region6: #{_gcnii_forward_impl.1} parent=1 // pred_check
      _
    $region7: #{_gcnii_forward_impl.1} parent=1 // pred_check_branch
      %22 = sbr.rel (0) target = $region9
    $region8: #{_gcnii_forward_impl.1} parent=1 // pred_region
      _
    $region9: #{_gcnii_forward_impl.1} parent=1 // pred_fallthru
      _
    // Predicated region
    $region10: #{_gcnii_forward_impl.1} parent=1 // pred_check
      _
    $region11: #{_gcnii_forward_impl.1} parent=1 // pred_check_branch
      %24 = sbr.rel (0) target = $region13
    $region12: #{_gcnii_forward_impl.1} parent=1 // pred_region
      _
    $region13: #{_gcnii_forward_impl.1} parent=1 // pred_fallthru
      _
    // Predicated region
    $region14: #{_gcnii_forward_impl.1} parent=1 // pred_check
      _
    $region15: #{_gcnii_forward_impl.1} parent=1 // pred_check_branch
      %26 = sbr.rel (0) target = $region17
    $region16: #{_gcnii_forward_impl.1} parent=1 // pred_region
      _
    $region17: #{_gcnii_forward_impl.1} parent=1 // pred_fallthru
      _
    // Predicated region
    $region18: #{_gcnii_forward_impl.1} parent=1 // pred_check
      _
    $region19: #{_gcnii_forward_impl.1} parent=1 // pred_check_branch
      %28 = sbr.rel (0) target = $region21
    $region20: #{_gcnii_forward_impl.1} parent=1 // pred_region
      %29 = dma.done [#allocation4], 16
    $region21: #{_gcnii_forward_impl.1} parent=1 // pred_fallthru
      _
    %30 = sfence
    %v32 = vld [vmem:[%s1] sm:$0xf]
    %v33 = vld [vmem:[%s1 + $0x4] sm:$0xf]
    %v34 = vld [vmem:[%s2] sm:$0xff]
    %v35 = vld [vmem:[%s2 + $0x8] sm:$0xff]
    %v36 = vld [vmem:[%s3] sm:$0xf]
    %v37 = vld [vmem:[%s3 + $0x4] sm:$0xf]
    %v38 = vld [vmem:[%s3 + $0x8] sm:$0xf]
    %v39 = vld [vmem:[%s3 + $0xc] sm:$0xf]
    %v40 = vld [vmem:[%s3 + $0x10] sm:$0xf]
    %v41 = vld [vmem:[%s3 + $0x14] sm:$0xf]
    %v42 = vld [vmem:[%s3 + $0x18] sm:$0xf]
    %v43 = vld [vmem:[%s3 + $0x1c] sm:$0xf]
    %v44 = vld [vmem:[%s3 + $0x20] sm:$0xf]
    %v45 = vld [vmem:[%s3 + $0x24] sm:$0xf]
    %v46 = vld [vmem:[%s3 + $0x28] sm:$0xf]
    %v47 = vld [vmem:[%s3 + $0x2c] sm:$0xf]
    %v48 = vld [vmem:[%s3 + $0x30] sm:$0xf]
    %v49 = vld [vmem:[%s3 + $0x34] sm:$0xf]
    %v50 = vld [vmem:[%s3 + $0x38] sm:$0xf]
    %v51 = vld [vmem:[%s3 + $0x3c] sm:$0xf]
    %s52 = sld [smem:[#allocation2]]
    %v53 = vpack.c.bf16 %v35, %v34
    %v56 = vunpack.c.l.b16 %v32
    %v57 = vunpack.c.l.b16 %v33
    %v58 = vpack.c.b16 %v57, %v56
    %vm59 = vcmask 130048
    %v61 = vsel %vm59, %v58, 0
    %63 = vmatprep.subr.bf16.mxu0 0
    %64 = vmatpush1.bf16.msra.mxu0 %v53
    %65 = vmatprep.subr.bf16.mxu0 0
    %66 = vmatpush1.bf16.msra.mxu0 0
    %67 = vmatprep.subr.bf16.mxu0 0
    %68 = vmatpush1.bf16.msra.mxu0 0
    %69 = vmatprep.subr.bf16.mxu0 0
    %70 = vmatpush1.bf16.msra.mxu0 0
    %71 = vmatprep.subr.bf16.mxu0 0
    %72 = vmatpush1.bf16.msra.mxu0 0
    %73 = vmatprep.subr.bf16.mxu0 0
    %74 = vmatpush1.bf16.msra.mxu0 0
    %75 = vmatprep.subr.bf16.mxu0 0
    %76 = vmatpush1.bf16.msra.mxu0 0
    %77 = vmatprep.subr.bf16.mxu0 0
    %78 = vmatpush1.bf16.msra.mxu0 0
    %79 = vmatprep.subr.bf16.mxu0 0
    %80 = vmatpush1.bf16.msra.mxu0 0
    %81 = vmatprep.subr.bf16.mxu0 0
    %82 = vmatpush1.bf16.msra.mxu0 0
    %83 = vmatprep.subr.bf16.mxu0 0
    %84 = vmatpush1.bf16.msra.mxu0 0
    %85 = vmatprep.subr.bf16.mxu0 0
    %86 = vmatpush1.bf16.msra.mxu0 0
    %87 = vmatprep.subr.bf16.mxu0 0
    %88 = vmatpush1.bf16.msra.mxu0 0
    %89 = vmatprep.subr.bf16.mxu0 0
    %90 = vmatpush1.bf16.msra.mxu0 0
    %91 = vmatprep.subr.bf16.mxu0 0
    %92 = vmatpush1.bf16.msra.mxu0 0
    %93 = vmatprep.subr.bf16.mxu0 0
    %94 = vmatpush1.bf16.msra.mxu0 0
    %95 = vmatprep.mubr.bf16.mxu0 0
    %96 = vmatmul.mubr.bf16.gmra.mrb[0].mxu0 %v61
    %v97 = vpop.f32.mrb[0].mxu0
    %v98 = vadd.f32 0.0, %v97
    %v99 = vpop.f32.mrb[0].mxu0
    %v100 = vpop.f32.mrb[0].mxu0
    %v101 = vadd.f32 0.0, %v100
    %v102 = vpop.f32.mrb[0].mxu0
    %103 = vdwg.mxu0
    %v104 = vmul.f32 %v98, 0.9
    %v105 = vmul.f32 %v101, 0.9
    %v106 = vmul.f32 %v34, 0.1
    %v107 = vmul.f32 %v35, 0.1
    %v108 = vadd.f32 %v104, %v106
    %v109 = vadd.f32 %v105, %v107
    %v110 = vpack.c.bf16 %v109, %v108
    %v127 = vunpack.c.l.b16 %v36
    %v128 = vunpack.c.l.b16 %v37
    %v129 = vunpack.c.l.b16 %v38
    %v130 = vunpack.c.l.b16 %v39
    %v131 = vunpack.c.l.b16 %v40
    %v132 = vunpack.c.l.b16 %v41
    %v133 = vunpack.c.l.b16 %v42
    %v134 = vunpack.c.l.b16 %v43
    %v135 = vunpack.c.l.b16 %v44
    %v136 = vunpack.c.l.b16 %v45
    %v137 = vunpack.c.l.b16 %v46
    %v138 = vunpack.c.l.b16 %v47
    %v139 = vunpack.c.l.b16 %v48
    %v140 = vunpack.c.l.b16 %v49
    %v141 = vunpack.c.l.b16 %v50
    %v142 = vunpack.c.l.b16 %v51
    %v143 = vpack.c.b16 %v128, %v127
    %v144 = vpack.c.b16 %v130, %v129
    %v145 = vpack.c.b16 %v132, %v131
    %v146 = vpack.c.b16 %v134, %v133
    %v147 = vpack.c.b16 %v136, %v135
    %v148 = vpack.c.b16 %v138, %v137
    %v149 = vpack.c.b16 %v140, %v139
    %v150 = vpack.c.b16 %v142, %v141
    %159 = vmatprep.subr.bf16.mxu0 0
    %160 = vmatpush1.bf16.msra.mxu0 %v143
    %161 = vmatprep.subr.bf16.mxu0 0
    %162 = vmatpush1.bf16.msra.mxu0 %v144
    %163 = vmatprep.subr.bf16.mxu0 0
    %164 = vmatpush1.bf16.msra.mxu0 %v145
    %165 = vmatprep.subr.bf16.mxu0 0
    %166 = vmatpush1.bf16.msra.mxu0 %v146
    %167 = vmatprep.subr.bf16.mxu0 0
    %168 = vmatpush1.bf16.msra.mxu0 %v147
    %169 = vmatprep.subr.bf16.mxu0 0
    %170 = vmatpush1.bf16.msra.mxu0 %v148
    %171 = vmatprep.subr.bf16.mxu0 0
    %172 = vmatpush1.bf16.msra.mxu0 %v149
    %173 = vmatprep.subr.bf16.mxu0 0
    %174 = vmatpush1.bf16.msra.mxu0 %v150
    %175 = vmatprep.subr.bf16.mxu0 0
    %176 = vmatpush1.bf16.msra.mxu0 0
    %177 = vmatprep.subr.bf16.mxu0 0
    %178 = vmatpush1.bf16.msra.mxu0 0
    %179 = vmatprep.subr.bf16.mxu0 0
    %180 = vmatpush1.bf16.msra.mxu0 0
    %181 = vmatprep.subr.bf16.mxu0 0
    %182 = vmatpush1.bf16.msra.mxu0 0
    %183 = vmatprep.subr.bf16.mxu0 0
    %184 = vmatpush1.bf16.msra.mxu0 0
    %185 = vmatprep.subr.bf16.mxu0 0
    %186 = vmatpush1.bf16.msra.mxu0 0
    %187 = vmatprep.subr.bf16.mxu0 0
    %188 = vmatpush1.bf16.msra.mxu0 0
    %189 = vmatprep.subr.bf16.mxu0 0
    %190 = vmatpush1.bf16.msra.mxu0 0
    %191 = vmatprep.mubr.bf16.mxu0 0
    %192 = vmatmul.mubr.bf16.gmra.mrb[0].mxu0 %v110
    %v193 = vpop.f32.mrb[0].mxu0
    %v194 = vadd.f32 0.0, %v193
    %v195 = vpop.f32.mrb[0].mxu0
    %v196 = vpop.f32.mrb[0].mxu0
    %v197 = vadd.f32 0.0, %v196
    %v198 = vpop.f32.mrb[0].mxu0
    %199 = vdwg.mxu0
    %v200 = vstv %s52
    %v201 = vmul.f32 %v200, %v194
    %v202 = vmul.f32 %v200, %v197
    %s203 = ssub.f32 1.0, %s52
    %v204 = vstv %s203
    %v205 = vmul.f32 %v204, %v108
    %v206 = vmul.f32 %v204, %v109
    %v207 = vadd.f32 %v201, %v205
    %v208 = vadd.f32 %v202, %v206
    %v209 = vmax.f32 %v207, 0.0
    %v210 = vmax.f32 %v208, 0.0
    %s211 = scalar_lea.vmem %s3, 64
    %v212 = vld [vmem:[%s211] sm:$0xf]
    %v213 = vld [vmem:[%s211 + $0x4] sm:$0xf]
    %v214 = vld [vmem:[%s211 + $0x8] sm:$0xf]
    %v215 = vld [vmem:[%s211 + $0xc] sm:$0xf]
    %v216 = vld [vmem:[%s211 + $0x10] sm:$0xf]
    %v217 = vld [vmem:[%s211 + $0x14] sm:$0xf]
    %v218 = vld [vmem:[%s211 + $0x18] sm:$0xf]
    %v219 = vld [vmem:[%s211 + $0x1c] sm:$0xf]
    %v220 = vld [vmem:[%s211 + $0x20] sm:$0xf]
    %v221 = vld [vmem:[%s211 + $0x24] sm:$0xf]
    %v222 = vld [vmem:[%s211 + $0x28] sm:$0xf]
    %v223 = vld [vmem:[%s211 + $0x2c] sm:$0xf]
    %v224 = vld [vmem:[%s211 + $0x30] sm:$0xf]
    %v225 = vld [vmem:[%s211 + $0x34] sm:$0xf]
    %v226 = vld [vmem:[%s211 + $0x38] sm:$0xf]
    %v227 = vld [vmem:[%s211 + $0x3c] sm:$0xf]
    %s228 = sld [smem:[#allocation2 + $0x1]]
    %v229 = vpack.c.bf16 %v210, %v209
    %230 = vmatprep.subr.bf16.mxu0 0
    %231 = vmatpush1.bf16.msra.mxu0 %v229
    %232 = vmatprep.subr.bf16.mxu0 0
    %233 = vmatpush1.bf16.msra.mxu0 0
    %234 = vmatprep.subr.bf16.mxu0 0
    %235 = vmatpush1.bf16.msra.mxu0 0
    %236 = vmatprep.subr.bf16.mxu0 0
    %237 = vmatpush1.bf16.msra.mxu0 0
    %238 = vmatprep.subr.bf16.mxu0 0
    %239 = vmatpush1.bf16.msra.mxu0 0
    %240 = vmatprep.subr.bf16.mxu0 0
    %241 = vmatpush1.bf16.msra.mxu0 0
    %242 = vmatprep.subr.bf16.mxu0 0
    %243 = vmatpush1.bf16.msra.mxu0 0
    %244 = vmatprep.subr.bf16.mxu0 0
    %245 = vmatpush1.bf16.msra.mxu0 0
    %246 = vmatprep.subr.bf16.mxu0 0
    %247 = vmatpush1.bf16.msra.mxu0 0
    %248 = vmatprep.subr.bf16.mxu0 0
    %249 = vmatpush1.bf16.msra.mxu0 0
    %250 = vmatprep.subr.bf16.mxu0 0
    %251 = vmatpush1.bf16.msra.mxu0 0
    %252 = vmatprep.subr.bf16.mxu0 0
    %253 = vmatpush1.bf16.msra.mxu0 0
    %254 = vmatprep.subr.bf16.mxu0 0
    %255 = vmatpush1.bf16.msra.mxu0 0
    %256 = vmatprep.subr.bf16.mxu0 0
    %257 = vmatpush1.bf16.msra.mxu0 0
    %258 = vmatprep.subr.bf16.mxu0 0
    %259 = vmatpush1.bf16.msra.mxu0 0
    %260 = vmatprep.subr.bf16.mxu0 0
    %261 = vmatpush1.bf16.msra.mxu0 0
    %262 = vmatprep.mubr.bf16.mxu0 0
    %263 = vmatmul.mubr.bf16.gmra.mrb[0].mxu0 %v61
    %v264 = vpop.f32.mrb[0].mxu0
    %v265 = vadd.f32 0.0, %v264
    %v266 = vpop.f32.mrb[0].mxu0
    %v267 = vpop.f32.mrb[0].mxu0
    %v268 = vadd.f32 0.0, %v267
    %v269 = vpop.f32.mrb[0].mxu0
    %270 = vdwg.mxu0
    %v271 = vmul.f32 %v265, 0.9
    %v272 = vmul.f32 %v268, 0.9
    %v273 = vadd.f32 %v271, %v106
    %v274 = vadd.f32 %v272, %v107
    %v275 = vpack.c.bf16 %v274, %v273
    %v292 = vunpack.c.l.b16 %v212
    %v293 = vunpack.c.l.b16 %v213
    %v294 = vunpack.c.l.b16 %v214
    %v295 = vunpack.c.l.b16 %v215
    %v296 = vunpack.c.l.b16 %v216
    %v297 = vunpack.c.l.b16 %v217
    %v298 = vunpack.c.l.b16 %v218
    %v299 = vunpack.c.l.b16 %v219
    %v300 = vunpack.c.l.b16 %v220
    %v301 = vunpack.c.l.b16 %v221
    %v302 = vunpack.c.l.b16 %v222
    %v303 = vunpack.c.l.b16 %v223
    %v304 = vunpack.c.l.b16 %v224
    %v305 = vunpack.c.l.b16 %v225
    %v306 = vunpack.c.l.b16 %v226
    %v307 = vunpack.c.l.b16 %v227
    %v308 = vpack.c.b16 %v293, %v292
    %v309 = vpack.c.b16 %v295, %v294
    %v310 = vpack.c.b16 %v297, %v296
    %v311 = vpack.c.b16 %v299, %v298
    %v312 = vpack.c.b16 %v301, %v300
    %v313 = vpack.c.b16 %v303, %v302
    %v314 = vpack.c.b16 %v305, %v304
    %v315 = vpack.c.b16 %v307, %v306
    %324 = vmatprep.subr.bf16.mxu0 0
    %325 = vmatpush1.bf16.msra.mxu0 %v308
    %326 = vmatprep.subr.bf16.mxu0 0
    %327 = vmatpush1.bf16.msra.mxu0 %v309
    %328 = vmatprep.subr.bf16.mxu0 0
    %329 = vmatpush1.bf16.msra.mxu0 %v310
    %330 = vmatprep.subr.bf16.mxu0 0
    %331 = vmatpush1.bf16.msra.mxu0 %v311
    %332 = vmatprep.subr.bf16.mxu0 0
    %333 = vmatpush1.bf16.msra.mxu0 %v312
    %334 = vmatprep.subr.bf16.mxu0 0
    %335 = vmatpush1.bf16.msra.mxu0 %v313
    %336 = vmatprep.subr.bf16.mxu0 0
    %337 = vmatpush1.bf16.msra.mxu0 %v314
    %338 = vmatprep.subr.bf16.mxu0 0
    %339 = vmatpush1.bf16.msra.mxu0 %v315
    %340 = vmatprep.subr.bf16.mxu0 0
    %341 = vmatpush1.bf16.msra.mxu0 0
    %342 = vmatprep.subr.bf16.mxu0 0
    %343 = vmatpush1.bf16.msra.mxu0 0
    %344 = vmatprep.subr.bf16.mxu0 0
    %345 = vmatpush1.bf16.msra.mxu0 0
    %346 = vmatprep.subr.bf16.mxu0 0
    %347 = vmatpush1.bf16.msra.mxu0 0
    %348 = vmatprep.subr.bf16.mxu0 0
    %349 = vmatpush1.bf16.msra.mxu0 0
    %350 = vmatprep.subr.bf16.mxu0 0
    %351 = vmatpush1.bf16.msra.mxu0 0
    %352 = vmatprep.subr.bf16.mxu0 0
    %353 = vmatpush1.bf16.msra.mxu0 0
    %354 = vmatprep.subr.bf16.mxu0 0
    %355 = vmatpush1.bf16.msra.mxu0 0
    %356 = vmatprep.mubr.bf16.mxu0 0
    %357 = vmatmul.mubr.bf16.gmra.mrb[0].mxu0 %v275
    %v358 = vpop.f32.mrb[0].mxu0
    %v359 = vadd.f32 0.0, %v358
    %v360 = vpop.f32.mrb[0].mxu0
    %v361 = vpop.f32.mrb[0].mxu0
    %v362 = vadd.f32 0.0, %v361
    %v363 = vpop.f32.mrb[0].mxu0
    %364 = vdwg.mxu0
    %v365 = vstv %s228
    %v366 = vmul.f32 %v365, %v359
    %v367 = vmul.f32 %v365, %v362
    %s368 = ssub.f32 1.0, %s228
    %v369 = vstv %s368
    %v370 = vmul.f32 %v369, %v273
    %v371 = vmul.f32 %v369, %v274
    %v372 = vadd.f32 %v366, %v370
    %v373 = vadd.f32 %v367, %v371
    %v374 = vmax.f32 %v372, 0.0
    %v375 = vmax.f32 %v373, 0.0
    %376 = vst [vmem:[#allocation5] sm:$0xff] %v374
    %377 = vst [vmem:[#allocation5 + $0x8] sm:$0xff] %v375
    // Predicated region
    $region22: #{_gcnii_forward_impl.1} parent=1 // pred_check
      _
    $region23: #{_gcnii_forward_impl.1} parent=1 // pred_check_branch
      %379 = sbr.rel (0) target = $region25
    $region24: #{_gcnii_forward_impl.1} parent=1 // pred_region
      %s381 = ssub.s32 256, 256
      %382 = vsyncadd [#allocation3], %s381
      %s383 = sshll.u32 [#allocation5], 4
      %s384 = int_to_ptr.vmem [resolvable:$true] %s383
      %389 = dma.vmem_to_hbm [thread:$0]  %s384, 256, %s4, [#allocation3], 128, 128, 8
    $region25: #{_gcnii_forward_impl.1} parent=1 // pred_fallthru
      _
    // Predicated region
    $region26: #{_gcnii_forward_impl.1} parent=1 // pred_check
      _
    $region27: #{_gcnii_forward_impl.1} parent=1 // pred_check_branch
      %391 = sbr.rel (0) target = $region29
    $region28: #{_gcnii_forward_impl.1} parent=1 // pred_region
      %392 = dma.done [#allocation3], 256
    $region29: #{_gcnii_forward_impl.1} parent=1 // pred_fallthru
      _
    %393 = vsyncpa [#allocation3], 1
    %394 = vsyncpa [#allocation4], 1

</llo_original>
